<compile_context>
chip_gen: v5e
topology: v5e:2x2
jax: 0.10.0
libtpu: 0.0.40
codegen_flags: <defaults>
</compile_context>

<pallas_src>
import functools

import jax
import jax.numpy as jnp
from jax import lax
from jax.experimental import pallas as pl
from jax.experimental.pallas import tpu as pltpu


def _largest_divisor(n: int, step: int, cap: int) -> int:
    """Largest divisor of n that is a multiple of `step` and <= cap (0 if none)."""
    best = 0
    m = step
    cap = min(cap, n)
    while m <= cap:
        if n % m == 0:
            best = m
        m += step
    return best


def _tensorcores_per_device() -> int:
    """Best-effort TensorCores-per-device (used only as a tiling heuristic)."""
    try:
        kind = jax.devices()[0].device_kind.lower().replace(" ", "")
    except Exception:
        return 1
    if "lite" in kind or "v5e" in kind or "v6e" in kind:
        return 1                      # single-TC chips
    for tag in ("v7", "7x", "v4", "v5p"):
        if tag in kind:
            return 2                  # megacore / dual-TC chips
    return 1


def _vmem_capacity_bytes() -> int:
    try:
        return int(pltpu.get_tpu_info().vmem_capacity_bytes)
    except Exception:
        return 64 * 1024 * 1024       # conservative: v7x per-TC VMEM


def _make_obvl_var_kernel(*, true_b: int, tile_b: int, chunk_rows: int,
                          tile_d: int, num_b: int, needs_mask: bool,
                          unroll: bool):
    inv_b = 1.0 / true_b
    inv_bm1 = 1.0 / (true_b - 1)
    num_chunks = tile_b // chunk_rows
    groups = chunk_rows // 8
    # Mean of the first sub-chunk's *valid* rows; padded rows (wrapper-added)
    # are zeros, so dividing the plain sum by the valid count is exact.
    ref_denom = 1.0 / min(chunk_rows, true_b)

    def kernel(y_hat_ref, var_ref, ref_row, s1, s2):
        bi = pl.program_id(1)                         # batch (reduction) axis

        @pl.when(bi == 0)
        def _():
            x0 = y_hat_ref[pl.ds(0, chunk_rows), :].astype(jnp.float32)
            # Shift reference (variance is shift-invariant; a data-centered
            # shift keeps one-pass sums safe when |mean| >> std).
            ref_row[...] = jnp.sum(x0, axis=0, keepdims=True) * ref_denom
            s1[...] = jnp.zeros_like(s1)
            s2[...] = jnp.zeros_like(s2)

        r = ref_row[...]                              # (1, tile_d)
        tile_base = bi * tile_b

        def body(c, carry):
            start = c * chunk_rows
            if not isinstance(start, int):
                start = pl.multiple_of(start, chunk_rows)
            x = y_hat_ref[pl.ds(start, chunk_rows), :].astype(jnp.float32)
            xc = x - r                                # (chunk_rows, tile_d)
            if needs_mask:
                row = lax.broadcasted_iota(jnp.int32, (chunk_rows, tile_d), 0)
                limit = true_b - (tile_base + start)  # rows >= limit are padding
                xc = jnp.where(row < limit, xc, 0.0)
            if groups == 1:
                s1[...] += xc                         # pure VALU adds
                s2[...] += xc * xc
            else:
                xg = xc.reshape(groups, 8, tile_d)    # sublane-group split (view)
                s1[...] += jnp.sum(xg, axis=0)        # VALU adds, no XLU
                s2[...] += jnp.sum(xg * xg, axis=0)
            return carry

        if num_chunks == 1:
            body(0, 0)
        else:
            lax.fori_loop(0, num_chunks, body, 0, unroll=unroll)

        @pl.when(bi == num_b - 1)
        def _():
            s1_tot = jnp.sum(s1[...], axis=0, keepdims=True)   # single 8->1 XLU
            s2_tot = jnp.sum(s2[...], axis=0, keepdims=True)
            var = (s2_tot - s1_tot * s1_tot * inv_b) * inv_bm1  # correction=1
            var_ref[...] = jnp.maximum(var, 0.0)      # rounding can't go negative

    return kernel


def output_batch_variance_loss(y_hat: jax.Array,
                               y: jax.Array | None = None,
                               *,
                               max_tile_bytes: int | None = None,
                               max_chunk_bytes: int = 2 * 1024 * 1024) -> jax.Array:
    """Returns a scalar: 1 / mean_d(var_b(y_hat[:, d], ddof=1)).  `y` is unused."""
    del y  # Unused by the loss (matches the PyTorch forward); never DMA'd.
    assert y_hat.ndim >= 2, "expected [B, ...] predictions"
    B = y_hat.shape[0]
    assert B >= 2, "batch variance with correction=1 needs at least 2 samples"
    y2 = y_hat.reshape(B, -1)                        # per-output-feature view
    D = y2.shape[1]
    itemsize = jnp.dtype(y2.dtype).itemsize

    # ---- per-generation budgets ------------------------------------------
    cores = _tensorcores_per_device()
    vmem_cap = _vmem_capacity_bytes()
    if vmem_cap >= 128 * 1024 * 1024:                # v5e / v6e: 128 MiB VMEM
        vmem_limit = 96 * 1024 * 1024
        default_tile = 16 * 1024 * 1024
    else:                                            # v7x: 64 MiB VMEM per TC
        vmem_limit = min(48 * 1024 * 1024, (vmem_cap * 3) // 4)
        default_tile = 8 * 1024 * 1024
    if max_tile_bytes is None:
        max_tile_bytes = default_tile

    # ---- batch padding: masked edge rows keep streaming for arbitrary B ---
    b_pad = -(-B // 8) * 8
    needs_mask = b_pad != B
    if needs_mask:
        y2 = jnp.pad(y2, ((0, b_pad - B), (0, 0)))

    # ---- feature (lane) tiling -------------------------------------------
    if cores >= 2 and D % 256 == 0:
        # >= 2 lane-dense feature blocks so dual-TC chips (v7x / megacore) can
        # shard the "parallel" axis; cap lifted to D // 2 per the review.
        tile_d = _largest_divisor(D, 128, D // 2) or D
    elif D % 128 == 0 and 8 * D * itemsize > max_tile_bytes:
        # Very wide D on a single-TC chip: split only if even an 8-row slab
        # would blow the per-buffer budget.
        tile_d = _largest_divisor(D, 128, max(128, max_tile_bytes // (8 * itemsize))) or D
    else:
        tile_d = D            # single-TC chips: all blocking on the batch axis
    # TODO(synk): when num_d == 1 on a dual-TC chip (D < 256 or D % 128 != 0),
    # a CORE_PARALLEL batch-halved variant with a cross-half moment combine
    # would recover the idle second TensorCore.
    num_d = D // tile_d

    # ---- batch (sublane) tiling: biggest multiple-of-8 tile within budget --
    rows_cap = max(8, (max_tile_bytes // (tile_d * itemsize)) // 8 * 8)
    tile_b = _largest_divisor(b_pad, 8, rows_cap) or b_pad
    num_b = b_pad // tile_b

    # ---- strip-mine rows inside a tile: f32 temporaries (cast/sub/square)
    #      stay ~O(max_chunk_bytes) regardless of DMA tile size (v7x VMEM) ----
    chunk_cap = max(8, min(512, max_chunk_bytes // (tile_d * 4)))
    chunk_rows = _largest_divisor(tile_b, 8, chunk_cap) or tile_b
    num_chunks = tile_b // chunk_rows

    kernel = _make_obvl_var_kernel(
        true_b=B, tile_b=tile_b, chunk_rows=chunk_rows, tile_d=tile_d,
        num_b=num_b, needs_mask=needs_mask, unroll=(num_chunks <= 8))

    # TODO(synk): for shapes where tile_b*tile_d*itemsize < ~2 MiB and num_b is
    # large, pipeline_mode=pl.Buffered(3) on the input BlockSpec would hide DMA
    # issue latency; left out to keep the minimal-risk default double-buffering.
    var = pl.pallas_call(
        kernel,
        out_shape=jax.ShapeDtypeStruct((1, D), jnp.float32),
        grid_spec=pltpu.PrefetchScalarGridSpec(
            num_scalar_prefetch=0,
            grid=(num_d, num_b),   # features outer/parallel, batch inner/reduction
            in_specs=[pl.BlockSpec((tile_b, tile_d), lambda di, bi: (bi, di))],
            out_specs=pl.BlockSpec((1, tile_d), lambda di, bi: (0, di)),
            scratch_shapes=[
                pltpu.VMEM((1, tile_d), jnp.float32),   # shift reference
                pltpu.VMEM((8, tile_d), jnp.float32),   # per-sublane sum(x - r)
                pltpu.VMEM((8, tile_d), jnp.float32),   # per-sublane sum((x-r)^2)
            ],
        ),
        compiler_params=pltpu.CompilerParams(
            dimension_semantics=("parallel", "arbitrary"),
            vmem_limit_bytes=vmem_limit,
        ),
    )(y2)

    # Tiny scalar epilogue: feature mean + reciprocal (negligible next to one
    # HBM pass over y_hat).  All-constant columns -> var 0 -> inf, as in torch.
    return 1.0 / jnp.mean(var)


if __name__ == "__main__":
    key = jax.random.PRNGKey(0)
    k1, k2, k3, k4, k5, k6 = jax.random.split(key, 6)

    def ref_loss(x):
        return 1.0 / jnp.mean(jnp.var(x.astype(jnp.float32), axis=0, ddof=1))

    # --- Test 1: basic shape, single grid step, single chunk -----------------
    B, D = 8, 128
    y_hat = jax.random.normal(k1, (B, D), dtype=jnp.float32) + 3.0  # nonzero mean
    y = jax.random.normal(k2, (B, D), dtype=jnp.float32)            # unused
    loss = jax.jit(output_batch_variance_loss)(y_hat, y)
    jax.block_until_ready(loss)
    assert jnp.allclose(loss, ref_loss(y_hat), rtol=1e-5, atol=1e-6), (loss, ref_loss(y_hat))

    # --- Test 2: multi batch-block grid + strip-mined chunks -----------------
    B2, D2 = 64, 256
    y_hat2 = jax.random.normal(k3, (B2, D2), dtype=jnp.float32) * 0.5 + 10.0
    loss2 = jax.jit(functools.partial(output_batch_variance_loss,
                                      max_tile_bytes=32768,
                                      max_chunk_bytes=8192))(y_hat2)
    jax.block_until_ready(loss2)
    assert jnp.allclose(loss2, ref_loss(y_hat2), rtol=1e-5, atol=1e-6), (loss2, ref_loss(y_hat2))

    # --- Test 3: bf16 input (half HBM bytes), f32 accumulation in-kernel -----
    y_hat3 = jax.random.normal(k4, (B, D), dtype=jnp.bfloat16)
    loss3 = jax.jit(output_batch_variance_loss)(y_hat3)
    jax.block_until_ready(loss3)
    assert jnp.allclose(loss3, ref_loss(y_hat3), rtol=1e-4, atol=1e-6), (loss3, ref_loss(y_hat3))

    # --- Test 4: odd batch (masked padded rows), single block ----------------
    y_hat4 = jax.random.normal(k5, (10, 128), dtype=jnp.float32) + 5.0
    loss4 = jax.jit(output_batch_variance_loss)(y_hat4)
    jax.block_until_ready(loss4)
    assert jnp.allclose(loss4, ref_loss(y_hat4), rtol=1e-5, atol=1e-6), (loss4, ref_loss(y_hat4))

    # --- Test 5: odd batch + multi chunk (reshape groups > 1) + mask in tail --
    y_hat5 = jax.random.normal(k6, (42, 128), dtype=jnp.float32) * 2.0 - 7.0
    loss5 = jax.jit(functools.partial(output_batch_variance_loss,
                                      max_chunk_bytes=8192))(y_hat5)
    jax.block_until_ready(loss5)
    assert jnp.allclose(loss5, ref_loss(y_hat5), rtol=1e-5, atol=1e-6), (loss5, ref_loss(y_hat5))

    print("KERNEL_OK")
</pallas_src>

<mosaic_0001>
module attributes {stable_mosaic.version = 11 : i64} {
  func.func @kernel(%arg0: i32, %arg1: i32, %arg2: memref<8x128xf32, #tpu.memory_space<vmem>>, %arg3: memref<1x128xf32, #tpu.memory_space<vmem>>, %arg4: memref<1x128xf32, #tpu.memory_space<vmem>>, %arg5: memref<8x128xf32, #tpu.memory_space<vmem>>, %arg6: memref<8x128xf32, #tpu.memory_space<vmem>>) attributes {dimension_semantics = [#tpu.dimension_semantics<parallel>, #tpu.dimension_semantics<arbitrary>], iteration_bounds = array<i64: 1, 1>, scalar_prefetch = 0 : i64, scratch_operands = 3 : i64, tpu.core_type = #tpu.core_type<tc>, window_params = [{transform_indices = @transform_0, window_bounds = array<i64: 8, 128>}, {transform_indices = @transform_1, window_bounds = array<i64: 1, 128>}]} {
    %c0_i32 = arith.constant 0 : i32
    %0 = arith.cmpi eq, %arg1, %c0_i32 : i32
    %1 = arith.extui %0 : i1 to i32
    %c0_i32_0 = arith.constant 0 : i32
    %2 = arith.cmpi ne, %1, %c0_i32_0 : i32
    scf.if %2 {
      %c0_14 = arith.constant 0 : index
      %c0_15 = arith.constant 0 : index
      %17 = vector.load %arg2[%c0_14, %c0_15] : memref<8x128xf32, #tpu.memory_space<vmem>>, vector<8x128xf32>
      %cst = arith.constant dense<0.000000e+00> : vector<128xf32>
      %18 = vector.multi_reduction <add>, %17, %cst [0] : vector<8x128xf32> to vector<128xf32>
      %19 = vector.shape_cast %18 : vector<128xf32> to vector<1x128xf32>
      %cst_16 = arith.constant 1.250000e-01 : f32
      %20 = vector.broadcast %cst_16 : f32 to vector<1x128xf32>
      %21 = arith.mulf %19, %20 : vector<1x128xf32>
      %c0_17 = arith.constant 0 : index
      %c0_18 = arith.constant 0 : index
      %22 = vector.load %arg4[%c0_17, %c0_18] : memref<1x128xf32, #tpu.memory_space<vmem>>, vector<1x128xf32>
      tpu.vector_store %arg4[%c0_17, %c0_18], %21 {strides = array<i32>} : memref<1x128xf32, #tpu.memory_space<vmem>>, vector<1x128xf32>,
      %cst_19 = arith.constant 0.000000e+00 : f32
      %23 = vector.broadcast %cst_19 : f32 to vector<8x128xf32>
      %c0_20 = arith.constant 0 : index
      %c0_21 = arith.constant 0 : index
      %24 = vector.load %arg5[%c0_20, %c0_21] : memref<8x128xf32, #tpu.memory_space<vmem>>, vector<8x128xf32>
      tpu.vector_store %arg5[%c0_20, %c0_21], %23 {strides = array<i32>} : memref<8x128xf32, #tpu.memory_space<vmem>>, vector<8x128xf32>,
      %cst_22 = arith.constant 0.000000e+00 : f32
      %25 = vector.broadcast %cst_22 : f32 to vector<8x128xf32>
      %c0_23 = arith.constant 0 : index
      %c0_24 = arith.constant 0 : index
      %26 = vector.load %arg6[%c0_23, %c0_24] : memref<8x128xf32, #tpu.memory_space<vmem>>, vector<8x128xf32>
      tpu.vector_store %arg6[%c0_23, %c0_24], %25 {strides = array<i32>} : memref<8x128xf32, #tpu.memory_space<vmem>>, vector<8x128xf32>,
    } else {
    }
    %c0 = arith.constant 0 : index
    %c0_1 = arith.constant 0 : index
    %3 = vector.load %arg4[%c0, %c0_1] : memref<1x128xf32, #tpu.memory_space<vmem>>, vector<1x128xf32>
    %c0_2 = arith.constant 0 : index
    %c0_3 = arith.constant 0 : index
    %4 = vector.load %arg2[%c0_2, %c0_3] : memref<8x128xf32, #tpu.memory_space<vmem>>, vector<8x128xf32>
    %5 = vector.broadcast %3 : vector<1x128xf32> to vector<8x128xf32>
    %6 = arith.subf %4, %5 : vector<8x128xf32>
    %c0_4 = arith.constant 0 : index
    %c0_5 = arith.constant 0 : index
    %7 = vector.load %arg5[%c0_4, %c0_5] : memref<8x128xf32, #tpu.memory_space<vmem>>, vector<8x128xf32>
    %8 = arith.addf %7, %6 : vector<8x128xf32>
    %c0_6 = arith.constant 0 : index
    %c0_7 = arith.constant 0 : index
    %9 = vector.load %arg5[%c0_6, %c0_7] : memref<8x128xf32, #tpu.memory_space<vmem>>, vector<8x128xf32>
    tpu.vector_store %arg5[%c0_6, %c0_7], %8 {strides = array<i32>} : memref<8x128xf32, #tpu.memory_space<vmem>>, vector<8x128xf32>,
    %c0_8 = arith.constant 0 : index
    %c0_9 = arith.constant 0 : index
    %10 = vector.load %arg6[%c0_8, %c0_9] : memref<8x128xf32, #tpu.memory_space<vmem>>, vector<8x128xf32>
    %11 = arith.mulf %6, %6 : vector<8x128xf32>
    %12 = arith.addf %10, %11 : vector<8x128xf32>
    %c0_10 = arith.constant 0 : index
    %c0_11 = arith.constant 0 : index
    %13 = vector.load %arg6[%c0_10, %c0_11] : memref<8x128xf32, #tpu.memory_space<vmem>>, vector<8x128xf32>
    tpu.vector_store %arg6[%c0_10, %c0_11], %12 {strides = array<i32>} : memref<8x128xf32, #tpu.memory_space<vmem>>, vector<8x128xf32>,
    %c0_i32_12 = arith.constant 0 : i32
    %14 = arith.cmpi eq, %arg1, %c0_i32_12 : i32
    %15 = arith.extui %14 : i1 to i32
    %c0_i32_13 = arith.constant 0 : i32
    %16 = arith.cmpi ne, %15, %c0_i32_13 : i32
    scf.if %16 {
      %c0_14 = arith.constant 0 : index
      %c0_15 = arith.constant 0 : index
      %17 = vector.load %arg5[%c0_14, %c0_15] : memref<8x128xf32, #tpu.memory_space<vmem>>, vector<8x128xf32>
      %cst = arith.constant dense<0.000000e+00> : vector<128xf32>
      %18 = vector.multi_reduction <add>, %17, %cst [0] : vector<8x128xf32> to vector<128xf32>
      %19 = vector.shape_cast %18 : vector<128xf32> to vector<1x128xf32>
      %c0_16 = arith.constant 0 : index
      %c0_17 = arith.constant 0 : index
      %20 = vector.load %arg6[%c0_16, %c0_17] : memref<8x128xf32, #tpu.memory_space<vmem>>, vector<8x128xf32>
      %cst_18 = arith.constant dense<0.000000e+00> : vector<128xf32>
      %21 = vector.multi_reduction <add>, %20, %cst_18 [0] : vector<8x128xf32> to vector<128xf32>
      %22 = vector.shape_cast %21 : vector<128xf32> to vector<1x128xf32>
      %23 = arith.mulf %19, %19 : vector<1x128xf32>
      %cst_19 = arith.constant 1.250000e-01 : f32
      %24 = vector.broadcast %cst_19 : f32 to vector<1x128xf32>
      %25 = arith.mulf %23, %24 : vector<1x128xf32>
      %26 = arith.subf %22, %25 : vector<1x128xf32>
      %cst_20 = arith.constant 0.142857149 : f32
      %27 = vector.broadcast %cst_20 : f32 to vector<1x128xf32>
      %28 = arith.mulf %26, %27 : vector<1x128xf32>
      %cst_21 = arith.constant 0.000000e+00 : f32
      %29 = vector.broadcast %cst_21 : f32 to vector<1x128xf32>
      %30 = arith.maximumf %28, %29 : vector<1x128xf32>
      %c0_22 = arith.constant 0 : index
      %c0_23 = arith.constant 0 : index
      %31 = vector.load %arg3[%c0_22, %c0_23] : memref<1x128xf32, #tpu.memory_space<vmem>>, vector<1x128xf32>
      tpu.vector_store %arg3[%c0_22, %c0_23], %30 {strides = array<i32>} : memref<1x128xf32, #tpu.memory_space<vmem>>, vector<1x128xf32>,
    } else {
    }
    return
  }
  func.func @transform_0(%arg0: i32, %arg1: i32) -> (i32, i32) {
    %c0_i32 = arith.constant 0 : i32
    return %arg1, %arg0 : i32, i32
  }
  func.func @transform_1(%arg0: i32, %arg1: i32) -> (i32, i32) {
    %c0_i32 = arith.constant 0 : i32
    %c0_i32_0 = arith.constant 0 : i32
    return %c0_i32, %arg0 : i32, i32
  }
}

</mosaic_0001>

<llo_original>
// kernel: output_batch_variance_loss.1
$region0: #{output_batch_variance_loss.1}
  #allocation0 [shape = 'u32[]', space=smem, size = 0x4, offset = 0x4, fixed_abs, tag = 'smem constant byte address 0x4 - core index']
  #allocation1 [shape = 'u32[72,128]{1,0:T(1,128)}', space=vmem, size = 0x9000, scoped, tag = 'internal scratch']
  #allocation2 [shape = 'f32[1,128]{1,0:T(1,128)}', space=vmem, size = 0x200, scoped, tag = 'scratch operand']
  #allocation3 [shape = 'f32[8,128]{1,0:T(8,128)}', space=vmem, size = 0x1000, scoped, tag = 'scratch operand']
  #allocation4 [shape = 'f32[8,128]{1,0:T(8,128)}', space=vmem, size = 0x1000, scoped, tag = 'scratch operand']
  %s0 = inlined_call_operand.hbm [shape: f32[8,128], index: 0, kind: input, shape index: {}]
  %s1 = inlined_call_operand.vmem [shape: f32[1,128], index: 1, kind: output, shape index: {}]
  %s2 = sld [smem:[#allocation0]]
  $region26: #{output_batch_variance_loss.1} parent=0
    _
  %s4 = ssub.s32 1, %s2
  %s5 = scalar_select 0, %s4, %s2
  $region1: #{output_batch_variance_loss.1} parent=0
    #allocation5 [shape = 'u8[4096]{0}', space=vmem, size = 0x1000, scoped, tag = 'input window, operand 0, single buffered']
    #allocation6 [shape = 's32[1]{0}', space=sflag, size = 0x4, scoped, tag = 'scoped memory for output_batch_variance_loss.1']
    %6 = vsyncpa [#allocation6], 0
    // Predicated region
    $region2: #{output_batch_variance_loss.1} parent=1 // pred_check
      _
    $region3: #{output_batch_variance_loss.1} parent=1 // pred_check_branch
      %8 = sbr.rel (0) target = $region5
    $region4: #{output_batch_variance_loss.1} parent=1 // pred_region
      %10 = vsyncadd [#allocation6], 0
      %s12 = sshll.u32 %s0, 4
      %s13 = int_to_ptr.hbm [resolvable:$true] %s12
      %s14 = sshll.u32 [#allocation5], 4
      %s15 = int_to_ptr.vmem [resolvable:$true] %s14
      %17 = dma.hbm_to_vmem [thread:$0]  %s13, 128, %s15, [#allocation6]
    $region5: #{output_batch_variance_loss.1} parent=1 // pred_fallthru
      _
    // Predicated region
    $region6: #{output_batch_variance_loss.1} parent=1 // pred_check
      _
    $region7: #{output_batch_variance_loss.1} parent=1 // pred_check_branch
      %19 = sbr.rel (0) target = $region9
    $region8: #{output_batch_variance_loss.1} parent=1 // pred_region
      %21 = dma.done [#allocation6], 128
    $region9: #{output_batch_variance_loss.1} parent=1 // pred_fallthru
      _
    %p22 = scmp.eq.s32.totalorder 0, 0
    // Predicated region
    $region10: #{output_batch_variance_loss.1} parent=1 // pred_check
      %p23 = pneg %p22
    $region11: #{output_batch_variance_loss.1} parent=1 // pred_check_branch
      %25 = sbr.rel (%p23) target = $region13
    $region12: #{output_batch_variance_loss.1} parent=1 // pred_region
      %v26 = vld [vmem:[#allocation5] sm:$0xff]
      %v27 = vrot.slane %v26, 4
      %v28 = vadd.f32 %v26, %v27
      %v29 = vrot.slane %v28, 2
      %v30 = vadd.f32 %v28, %v29
      %v31 = vrot.slane %v30, 1
      %v32 = vadd.f32 %v30, %v31
      %v33 = vmul.f32 %v32, 0.125
      %34 = vst [vmem:[#allocation2] sm:$0x1] %v33
      %35 = vst [vmem:[#allocation3] sm:$0xff] 0.0
      %36 = vst [vmem:[#allocation4] sm:$0xff] 0.0
    $region13: #{output_batch_variance_loss.1} parent=1 // pred_fallthru
      _
    %v37 = vld [vmem:[#allocation2] sm:$0x1]
    %v38 = vld [vmem:[#allocation5] sm:$0xff]
    %v40 = vperm.slane %v37, 0
    %v42 = vsub.f32 %v38, %v40
    %v43 = vld [vmem:[#allocation3] sm:$0xff]
    %v44 = vadd.f32 %v43, %v42
    %45 = vst [vmem:[#allocation3] sm:$0xff] %v44
    %v46 = vld [vmem:[#allocation4] sm:$0xff]
    %v47 = vmul.f32 %v42, %v42
    %v48 = vadd.f32 %v46, %v47
    %49 = vst [vmem:[#allocation4] sm:$0xff] %v48
    // Predicated region
    $region14: #{output_batch_variance_loss.1} parent=1 // pred_check
      %p50 = pneg %p22
    $region15: #{output_batch_variance_loss.1} parent=1 // pred_check_branch
      %52 = sbr.rel (%p50) target = $region17
    $region16: #{output_batch_variance_loss.1} parent=1 // pred_region
      %v53 = vld [vmem:[#allocation3] sm:$0xff]
      %v54 = vrot.slane %v53, 4
      %v55 = vadd.f32 %v53, %v54
      %v56 = vrot.slane %v55, 2
      %v57 = vadd.f32 %v55, %v56
      %v58 = vrot.slane %v57, 1
      %v59 = vadd.f32 %v57, %v58
      %v60 = vld [vmem:[#allocation4] sm:$0xff]
      %v61 = vrot.slane %v60, 4
      %v62 = vadd.f32 %v60, %v61
      %v63 = vrot.slane %v62, 2
      %v64 = vadd.f32 %v62, %v63
      %v65 = vrot.slane %v64, 1
      %v66 = vadd.f32 %v64, %v65
      %v67 = vmul.f32 %v59, %v59
      %v68 = vmul.f32 %v67, 0.125
      %v69 = vsub.f32 %v66, %v68
      %v70 = vmul.f32 %v69, 0.14285715
      %v71 = vmax.f32 %v70, 0.0
      %72 = vst [vmem:[%s1] sm:$0x1] %v71
    $region17: #{output_batch_variance_loss.1} parent=1 // pred_fallthru
      _
    // Predicated region
    $region18: #{output_batch_variance_loss.1} parent=1 // pred_check
      _
    $region19: #{output_batch_variance_loss.1} parent=1 // pred_check_branch
      %74 = sbr.rel (0) target = $region21
    $region20: #{output_batch_variance_loss.1} parent=1 // pred_region
      _
    $region21: #{output_batch_variance_loss.1} parent=1 // pred_fallthru
      _
    // Predicated region
    $region22: #{output_batch_variance_loss.1} parent=1 // pred_check
      _
    $region23: #{output_batch_variance_loss.1} parent=1 // pred_check_branch
      %76 = sbr.rel (0) target = $region25
    $region24: #{output_batch_variance_loss.1} parent=1 // pred_region
      _
    $region25: #{output_batch_variance_loss.1} parent=1 // pred_fallthru
      _
    %77 = vsyncpa [#allocation6], 1

</llo_original>
